<compile_context>
chip_gen: v7x
topology: tpu7x:2x2x1
jax: 0.10.0
libtpu: 0.0.40
codegen_flags: <defaults>
</compile_context>

<pallas_src>
import functools

import jax
import jax.numpy as jnp
from jax.experimental import pallas as pl
from jax.experimental.pallas import tpu as pltpu

C_FEAT = 2048          # backbone output channels (fixed by the module)
GEM_EPS = 1e-6         # GeneralizedMeanPoolingP eps
BN_EPS = 1e-5          # nn.BatchNorm1d default eps


# ---------------------------------------------------------------------------
# Fused kernel: stem (1x1 conv, bias folded) + ReLU + GeM accumulate + BN
# ---------------------------------------------------------------------------
def _fused_kernel(x_ref, w_ref, scale_ref, shift_ref, out_ref, acc_ref,
                  *, s_total, p):
    s = pl.program_id(2)                       # spatial-tile index (reduction)

    @pl.when(s == 0)
    def _():
        acc_ref[...] = jnp.zeros_like(acc_ref)

    # Stem tile on the MXU: [tile_s, K] @ [K, tile_c]. The bias rides on the
    # MXU via the ones column in x / bias row in w (no separate VALU pass).
    y = jnp.dot(x_ref[0], w_ref[...], preferred_element_type=jnp.float32)
    # ReLU followed by GeM clamp(min=eps) collapses into a single max.
    y = jnp.maximum(y, GEM_EPS)

    # GeM power: p is a frozen parameter (3.0) at eval time -> integer-power
    # unroll on the 4 VALU slots instead of exp/log through the single EUP.
    if float(p) == int(p) and 1 <= int(p) <= 8:
        yp = y
        for _ in range(int(p) - 1):
            yp = yp * y
    else:                                       # general (non-integer) fallback
        yp = jnp.exp(jnp.float32(p) * jnp.log(y))

    tile_s = yp.shape[0]
    acc_rows = acc_ref.shape[0]
    if acc_rows > 1 and tile_s % acc_rows == 0:
        # Sublane-group partial sum: pure VALU adds, unmasked (8, tile_c) store.
        yp3 = yp.reshape(tile_s // acc_rows, acc_rows, yp.shape[-1])
        acc_ref[...] += jnp.sum(yp3, axis=0)
    else:                                       # ragged-S fallback
        acc_ref[...] += jnp.sum(yp, axis=0, keepdims=True)

    @pl.when(s == pl.num_programs(2) - 1)
    def _():
        # Single cross-sublane collapse per (batch, channel-block).
        total = jnp.sum(acc_ref[...], axis=0, keepdims=True)        # [1, tile_c]
        mean = total * jnp.float32(1.0 / s_total)                   # spatial mean
        pooled = jnp.exp(jnp.log(mean) * jnp.float32(1.0 / p))      # ^(1/p), tiny
        bn = pooled * scale_ref[...] + shift_ref[...]               # folded BN1d
        out_ref[...] = bn[None].astype(out_ref.dtype)
        # NOTE: Classifier's linear (cls_score) is intentionally NOT computed:
        # Model.forward discards it in eval mode.


def _pick_tile(extent, max_tile, multiple):
    """Largest multiple of `multiple` <= max_tile dividing extent; else extent."""
    t = min(max_tile, extent)
    t -= t % multiple
    while t >= multiple:
        if extent % t == 0:
            return t
        t -= multiple
    return extent


# ---------------------------------------------------------------------------
# Wrapper
# ---------------------------------------------------------------------------
def model_forward(x_nchw, params, max_tile_s=512, max_tile_c=1024):
    """Eval-mode Model.forward: returns backbone_bn_features [B, 2048]."""
    B, Cin, H, W = x_nchw.shape
    S = H * W
    w_stem = params["w_stem"]                  # [Cin, C]
    b_stem = params["b_stem"]                  # [1, C]
    C = w_stem.shape[1]
    p = float(params["gem_p"])

    # Channels-last, spatial flattened, plus a ones column so the stem bias is
    # folded into the MXU contraction (K = Cin + 1). x is tiny vs. the
    # 2048-channel feature work, so this wrapper pass is negligible.
    x = jnp.transpose(x_nchw, (0, 2, 3, 1)).reshape(B, S, Cin)
    x_aug = jnp.concatenate([x, jnp.ones((B, S, 1), x.dtype)], axis=-1)
    w_aug = jnp.concatenate([w_stem, b_stem], axis=0)           # [Cin+1, C]
    K = Cin + 1

    tile_s = _pick_tile(S, max_tile_s, 8)
    tile_c = _pick_tile(C, max_tile_c, 128)
    acc_rows = 8 if tile_s % 8 == 0 else 1
    grid = (B, C // tile_c, S // tile_s)       # reduction (spatial) axis last

    kernel = functools.partial(_fused_kernel, s_total=S, p=p)

    out = pl.pallas_call(
        kernel,
        out_shape=jax.ShapeDtypeStruct((B, 1, C), jnp.float32),
        grid_spec=pltpu.PrefetchScalarGridSpec(
            num_scalar_prefetch=0,
            grid=grid,
            in_specs=[
                # Streamed input tile: [1, tile_s, K] per (b, s); reused over n.
                pl.BlockSpec((1, tile_s, K), lambda b, n, s: (b, s, 0)),
                # Weight slice / BN params: constant over (b, s), sliced over n.
                pl.BlockSpec((K, tile_c), lambda b, n, s: (0, n)),
                pl.BlockSpec((1, tile_c), lambda b, n, s: (0, n)),
                pl.BlockSpec((1, tile_c), lambda b, n, s: (0, n)),
            ],
            out_specs=pl.BlockSpec((1, 1, tile_c), lambda b, n, s: (b, 0, n)),
            scratch_shapes=[pltpu.VMEM((acc_rows, tile_c), jnp.float32)],
        ),
        compiler_params=pltpu.CompilerParams(
            dimension_semantics=("parallel", "parallel", "arbitrary"),
            vmem_limit_bytes=32 * 1024 * 1024,
        ),
    )(x_aug, w_aug, params["bn_scale"], params["bn_shift"])
    return out.reshape(B, C)


# ---------------------------------------------------------------------------
# Deterministic parameter setup + pure-JAX reference + run
# ---------------------------------------------------------------------------
def make_params(key, cin):
    ks = jax.random.split(key, 6)
    w_stem = jax.random.normal(ks[0], (cin, C_FEAT), jnp.float32) * 0.1
    b_stem = jax.random.normal(ks[1], (1, C_FEAT), jnp.float32) * 0.05
    gamma = 1.0 + 0.1 * jax.random.normal(ks[2], (C_FEAT,), jnp.float32)
    beta = 0.1 * jax.random.normal(ks[3], (C_FEAT,), jnp.float32)
    run_mean = 0.1 * jax.random.normal(ks[4], (C_FEAT,), jnp.float32)
    run_var = 0.5 + jax.random.uniform(ks[5], (C_FEAT,), jnp.float32)
    scale = gamma / jnp.sqrt(run_var + BN_EPS)      # folded inference BN
    shift = beta - run_mean * scale
    return dict(w_stem=w_stem, b_stem=b_stem,
                gem_p=3.0,                           # GeM p init = 3 (frozen)
                bn_scale=scale.reshape(1, C_FEAT),
                bn_shift=shift.reshape(1, C_FEAT))


def reference_forward(x_nchw, params):
    B, Cin, H, W = x_nchw.shape
    x = jnp.transpose(x_nchw, (0, 2, 3, 1)).reshape(B, H * W, Cin)
    feats = jnp.maximum(
        jnp.einsum("bsc,cd->bsd", x, params["w_stem"]) + params["b_stem"], 0.0)
    p = params["gem_p"]
    pooled = jnp.mean(jnp.maximum(feats, GEM_EPS) ** p, axis=1) ** (1.0 / p)
    return pooled * params["bn_scale"] + params["bn_shift"]


if __name__ == "__main__":
    key = jax.random.PRNGKey(0)
    kx, kp = jax.random.split(key)
    B, Cin, H, W = 2, 4, 16, 8            # small NCHW input (ReID-like aspect)
    x = jax.random.normal(kx, (B, Cin, H, W), jnp.float32)
    params = make_params(kp, Cin)

    # max_tile_s=64 -> spatial grid of 2 (exercises multi-tile GeM accumulation);
    # tile_c=1024 -> 2 channel blocks (exercises the channel-parallel axis).
    out = jax.block_until_ready(
        model_forward(x, params, max_tile_s=64, max_tile_c=1024))

    ref = reference_forward(x, params)
    assert out.shape == (B, C_FEAT), out.shape
    err = float(jnp.max(jnp.abs(out - ref)))
    assert jnp.allclose(out, ref, rtol=2e-3, atol=2e-3), err
    print("KERNEL_OK")
</pallas_src>

<mosaic_0001>
module attributes {stable_mosaic.version = 11 : i64} {
  func.func @_fused_kernel(%arg0: i32, %arg1: i32, %arg2: i32, %arg3: memref<1x64x5xf32, #tpu.memory_space<vmem>>, %arg4: memref<5x1024xf32, #tpu.memory_space<vmem>>, %arg5: memref<1x1024xf32, #tpu.memory_space<vmem>>, %arg6: memref<1x1024xf32, #tpu.memory_space<vmem>>, %arg7: memref<1x1x1024xf32, #tpu.memory_space<vmem>>, %arg8: memref<8x1024xf32, #tpu.memory_space<vmem>>) attributes {dimension_semantics = [#tpu.dimension_semantics<parallel>, #tpu.dimension_semantics<parallel>, #tpu.dimension_semantics<arbitrary>], iteration_bounds = array<i64: 2, 2, 2>, scalar_prefetch = 0 : i64, scratch_operands = 1 : i64, tpu.core_type = #tpu.core_type<tc>, window_params = [{transform_indices = @transform_0, window_bounds = array<i64: 1, 64, 5>}, {transform_indices = @transform_1, window_bounds = array<i64: 5, 1024>}, {transform_indices = @transform_2, window_bounds = array<i64: 1, 1024>}, {transform_indices = @transform_3, window_bounds = array<i64: 1, 1024>}, {transform_indices = @transform_4, window_bounds = array<i64: 1, 1, 1024>}]} {
    %c0_i32 = arith.constant 0 : i32
    %0 = arith.cmpi eq, %arg2, %c0_i32 : i32
    %1 = arith.extui %0 : i1 to i32
    %c0_i32_0 = arith.constant 0 : i32
    %2 = arith.cmpi ne, %1, %c0_i32_0 : i32
    scf.if %2 {
      %cst_12 = arith.constant 0.000000e+00 : f32
      %19 = vector.broadcast %cst_12 : f32 to vector<8x1024xf32>
      %c0_13 = arith.constant 0 : index
      %c0_14 = arith.constant 0 : index
      %20 = vector.load %arg8[%c0_13, %c0_14] : memref<8x1024xf32, #tpu.memory_space<vmem>>, vector<8x1024xf32>
      tpu.vector_store %arg8[%c0_13, %c0_14], %19 {strides = array<i32>} : memref<8x1024xf32, #tpu.memory_space<vmem>>, vector<8x1024xf32>,
    } else {
    }
    %c0 = arith.constant 0 : index
    %c0_1 = arith.constant 0 : index
    %c0_2 = arith.constant 0 : index
    %3 = vector.load %arg3[%c0, %c0_1, %c0_2] : memref<1x64x5xf32, #tpu.memory_space<vmem>>, vector<1x64x5xf32>
    %4 = vector.shape_cast %3 : vector<1x64x5xf32> to vector<64x5xf32>
    %c0_3 = arith.constant 0 : index
    %c0_4 = arith.constant 0 : index
    %5 = vector.load %arg4[%c0_3, %c0_4] : memref<5x1024xf32, #tpu.memory_space<vmem>>, vector<5x1024xf32>
    %cst = arith.constant dense<0.000000e+00> : vector<64x1024xf32>
    %6 = tpu.matmul %4, %5, %cst {dimension_numbers = #tpu.dot_dimension_numbers<[1], [0], [0], [1], [0, 0, 1, 1], [], []>} : vector<64x5xf32>, vector<5x1024xf32>, vector<64x1024xf32> -> vector<64x1024xf32>
    %cst_5 = arith.constant 9.99999997E-7 : f32
    %7 = vector.broadcast %cst_5 : f32 to vector<64x1024xf32>
    %8 = arith.maximumf %6, %7 : vector<64x1024xf32>
    %9 = arith.mulf %8, %8 : vector<64x1024xf32>
    %10 = arith.mulf %9, %8 : vector<64x1024xf32>
    %11 = vector.shape_cast %10 : vector<64x1024xf32> to vector<8x8x1024xf32>
    %c0_6 = arith.constant 0 : index
    %c0_7 = arith.constant 0 : index
    %12 = vector.load %arg8[%c0_6, %c0_7] : memref<8x1024xf32, #tpu.memory_space<vmem>>, vector<8x1024xf32>
    %cst_8 = arith.constant dense<0.000000e+00> : vector<8x1024xf32>
    %13 = vector.multi_reduction <add>, %11, %cst_8 [0] : vector<8x8x1024xf32> to vector<8x1024xf32>
    %14 = arith.addf %12, %13 : vector<8x1024xf32>
    %c0_9 = arith.constant 0 : index
    %c0_10 = arith.constant 0 : index
    %15 = vector.load %arg8[%c0_9, %c0_10] : memref<8x1024xf32, #tpu.memory_space<vmem>>, vector<8x1024xf32>
    tpu.vector_store %arg8[%c0_9, %c0_10], %14 {strides = array<i32>} : memref<8x1024xf32, #tpu.memory_space<vmem>>, vector<8x1024xf32>,
    %c1_i32 = arith.constant 1 : i32
    %16 = arith.cmpi eq, %arg2, %c1_i32 : i32
    %17 = arith.extui %16 : i1 to i32
    %c0_i32_11 = arith.constant 0 : i32
    %18 = arith.cmpi ne, %17, %c0_i32_11 : i32
    scf.if %18 {
      %c0_12 = arith.constant 0 : index
      %c0_13 = arith.constant 0 : index
      %19 = vector.load %arg8[%c0_12, %c0_13] : memref<8x1024xf32, #tpu.memory_space<vmem>>, vector<8x1024xf32>
      %cst_14 = arith.constant dense<0.000000e+00> : vector<1024xf32>
      %20 = vector.multi_reduction <add>, %19, %cst_14 [0] : vector<8x1024xf32> to vector<1024xf32>
      %21 = vector.shape_cast %20 : vector<1024xf32> to vector<1x1024xf32>
      %cst_15 = arith.constant 7.812500e-03 : f32
      %22 = vector.broadcast %cst_15 : f32 to vector<1x1024xf32>
      %23 = arith.mulf %21, %22 : vector<1x1024xf32>
      %24 = math.log %23 : vector<1x1024xf32>
      %cst_16 = arith.constant 0.333333343 : f32
      %25 = vector.broadcast %cst_16 : f32 to vector<1x1024xf32>
      %26 = arith.mulf %24, %25 : vector<1x1024xf32>
      %27 = math.exp %26 : vector<1x1024xf32>
      %c0_17 = arith.constant 0 : index
      %c0_18 = arith.constant 0 : index
      %28 = vector.load %arg5[%c0_17, %c0_18] : memref<1x1024xf32, #tpu.memory_space<vmem>>, vector<1x1024xf32>
      %29 = arith.mulf %27, %28 : vector<1x1024xf32>
      %c0_19 = arith.constant 0 : index
      %c0_20 = arith.constant 0 : index
      %30 = vector.load %arg6[%c0_19, %c0_20] : memref<1x1024xf32, #tpu.memory_space<vmem>>, vector<1x1024xf32>
      %31 = arith.addf %29, %30 : vector<1x1024xf32>
      %32 = vector.shape_cast %31 : vector<1x1024xf32> to vector<1x1x1024xf32>
      %c0_21 = arith.constant 0 : index
      %c0_22 = arith.constant 0 : index
      %c0_23 = arith.constant 0 : index
      %33 = vector.load %arg7[%c0_21, %c0_22, %c0_23] : memref<1x1x1024xf32, #tpu.memory_space<vmem>>, vector<1x1x1024xf32>
      tpu.vector_store %arg7[%c0_21, %c0_22, %c0_23], %32 {strides = array<i32>} : memref<1x1x1024xf32, #tpu.memory_space<vmem>>, vector<1x1x1024xf32>,
    } else {
    }
    return
  }
  func.func @transform_0(%arg0: i32, %arg1: i32, %arg2: i32) -> (i32, i32, i32) {
    %c0_i32 = arith.constant 0 : i32
    %c0_i32_0 = arith.constant 0 : i32
    return %arg0, %arg2, %c0_i32 : i32, i32, i32
  }
  func.func @transform_1(%arg0: i32, %arg1: i32, %arg2: i32) -> (i32, i32) {
    %c0_i32 = arith.constant 0 : i32
    %c0_i32_0 = arith.constant 0 : i32
    return %c0_i32, %arg1 : i32, i32
  }
  func.func @transform_2(%arg0: i32, %arg1: i32, %arg2: i32) -> (i32, i32) {
    %c0_i32 = arith.constant 0 : i32
    %c0_i32_0 = arith.constant 0 : i32
    return %c0_i32, %arg1 : i32, i32
  }
  func.func @transform_3(%arg0: i32, %arg1: i32, %arg2: i32) -> (i32, i32) {
    %c0_i32 = arith.constant 0 : i32
    %c0_i32_0 = arith.constant 0 : i32
    return %c0_i32, %arg1 : i32, i32
  }
  func.func @transform_4(%arg0: i32, %arg1: i32, %arg2: i32) -> (i32, i32, i32) {
    %c0_i32 = arith.constant 0 : i32
    %c0_i32_0 = arith.constant 0 : i32
    return %arg0, %c0_i32, %arg1 : i32, i32, i32
  }
}

</mosaic_0001>

<llo_original>
// kernel: tpu_custom_call.1
$region0: #{tpu_custom_call.1}
  #allocation0 [shape = 'u32[]', space=smem, size = 0x4, offset = 0x4, fixed_abs, tag = 'smem constant byte address 0x4 - core index']
  #allocation1 [shape = 'u32[144,128]{1,0:T(1,128)}', space=vmem, size = 0x12000, scoped, tag = 'internal scratch']
  #allocation2 [shape = 'f32[8,1024]{1,0:T(8,128)}', space=vmem, size = 0x8000, scoped, tag = 'scratch operand']
  %s0 = inlined_call_operand.vmem [shape: f32[2,128,5], index: 0, kind: input, shape index: {}]
  %s1 = inlined_call_operand.vmem [shape: f32[5,2048], index: 1, kind: input, shape index: {}]
  %s2 = inlined_call_operand.vmem [shape: f32[1,2048], index: 2, kind: input, shape index: {}]
  %s3 = inlined_call_operand.vmem [shape: f32[1,2048], index: 3, kind: input, shape index: {}]
  %s4 = inlined_call_operand.hbm [shape: f32[2,1,2048], index: 4, kind: output, shape index: {}]
  %s5 = sld [smem:[#allocation0]]
  $region57: #{tpu_custom_call.1} parent=0
    _
  %s7 = ssub.s32 1, %s5
  %s8 = scalar_select 0, %s7, %s5
  $region1: #{tpu_custom_call.1} parent=0
    #allocation3 [shape = 'u8[8192]{0}', space=vmem, size = 0x2000, scoped, tag = 'output window, operand 0']
    #allocation4 [shape = 's32[2]{0}', space=sflag, size = 0x8, scoped, tag = 'scoped memory for tpu_custom_call.1']
    %9 = vsyncpa [#allocation4], 0
    %s10 = scalar_lea.sflag [#allocation4], 1
    %11 = vsyncpa %s10, 0
    loop: start=0, step=1, limit=10
    $region2: #{tpu_custom_call.1} parent=1 // loop_pre_header
      _
    $region3: #{tpu_custom_call.1} parent=1 // loop_header
      %s13 = sphi 0, %s17
      %p14 = scmp.ge.s32.totalorder %s13, 10
      %s20 = sphi 0, %s39
      %s21 = sphi 0, %s35
      %s22 = sphi 0, %s31
      %s23 = sphi 0, %s20
      %s24 = sphi 0, %s21
      %s25 = sphi 0, %s22
      %s26 = sphi 0, %s23
      %s27 = sphi 0, %s24
      %s28 = sphi 0, %s25
      %s44 = sphi 0, %s46
      %s47 = sphi 0, %s44
      %s48 = sphi 0, %s47
      %s64 = sphi 0, %s48
      %s70 = sphi 0, %s72
      %s73 = sphi 0, %s70
      %s74 = sphi 0, %s73
      %s90 = sphi 0, %s74
      %s96 = sphi 0, %s98
      %s99 = sphi 0, %s96
      %s100 = sphi 0, %s99
      %s116 = sphi 0, %s100
      %s122 = sphi 0, %s124
      %s125 = sphi 0, %s122
      %s126 = sphi 0, %s125
      %s142 = sphi 0, %s126
      %s150 = sphi 0, %s152
      %s153 = sphi 0, %s150
      %s154 = sphi 0, %s153
      %s170 = sphi 0, %s154
    $region4: #{tpu_custom_call.1} parent=1 // loop_header_branch
      %16 = sbr.rel (%p14) target = $region8
    $region5: #{tpu_custom_call.1} parent=1 // loop_body
      %s18 = ssub.s32 %s13, 1
      %s19 = ssub.s32 %s13, 2
      %s29 = sadd.s32 1, %s22
      %p30 = scmp.ge.s32.totalorder %s29, 2
      %s31 = scalar_select %p30, 0, %s29
      %s32 = sadd.s32 1, %s21
      %s33 = scalar_select %p30, %s32, %s21
      %p34 = scmp.ge.s32.totalorder %s33, 2
      %s35 = scalar_select %p34, 0, %s33
      %s36 = sadd.s32 1, %s20
      %s37 = scalar_select %p34, %s36, %s20
      %p38 = scmp.ge.s32.totalorder %s37, 2
      %s39 = scalar_select %p38, 0, %s37
      %s40 = ssub.s32 %s20, %s39
      %s41 = ssub.s32 %s22, %s31
      %s42 = sor.u32 %s40, %s41
      %p43 = scmp.eq.s32.totalorder %s42, 0
      %s45 = sadd.s32 %s44, 1
      %s46 = scalar_select %p43, %s44, %s45
      %p49 = pneg %p43
      %p50 = scmp.eq.s32.totalorder %s13, 7
      %p51 = por %p49, %p50
      %p52 = scmp.ne.s32.totalorder %s44, %s47
      %p53 = scmp.eq.s32.totalorder %s13, 0
      %p54 = por %p52, %p53
      %p55 = scmp.ne.s32.totalorder %s44, %s47
      %p56 = scmp.eq.s32.totalorder %s18, 7
      %p57 = por %p55, %p56
      %p58 = scmp.ne.s32.totalorder %s47, %s48
      %p59 = scmp.eq.s32.totalorder %s18, 0
      %p60 = por %p58, %p59
      %p61 = scmp.ne.s32.totalorder %s47, %s48
      %p62 = scmp.eq.s32.totalorder %s19, 7
      %p63 = por %p61, %p62
      %p65 = scmp.ne.s32.totalorder %s48, %s64
      %p66 = scmp.eq.s32.totalorder %s19, 0
      %p67 = por %p65, %p66
      %s68 = ssub.s32 %s21, %s35
      %p69 = scmp.eq.s32.totalorder %s68, 0
      %s71 = sadd.s32 %s70, 1
      %s72 = scalar_select %p69, %s70, %s71
      %p75 = pneg %p69
      %p76 = scmp.eq.s32.totalorder %s13, 7
      %p77 = por %p75, %p76
      %p78 = scmp.ne.s32.totalorder %s70, %s73
      %p79 = scmp.eq.s32.totalorder %s13, 0
      %p80 = por %p78, %p79
      %p81 = scmp.ne.s32.totalorder %s70, %s73
      %p82 = scmp.eq.s32.totalorder %s18, 7
      %p83 = por %p81, %p82
      %p84 = scmp.ne.s32.totalorder %s73, %s74
      %p85 = scmp.eq.s32.totalorder %s18, 0
      %p86 = por %p84, %p85
      %p87 = scmp.ne.s32.totalorder %s73, %s74
      %p88 = scmp.eq.s32.totalorder %s19, 7
      %p89 = por %p87, %p88
      %p91 = scmp.ne.s32.totalorder %s74, %s90
      %p92 = scmp.eq.s32.totalorder %s19, 0
      %p93 = por %p91, %p92
      %s94 = ssub.s32 %s21, %s35
      %p95 = scmp.eq.s32.totalorder %s94, 0
      %s97 = sadd.s32 %s96, 1
      %s98 = scalar_select %p95, %s96, %s97
      %p101 = pneg %p95
      %p102 = scmp.eq.s32.totalorder %s13, 7
      %p103 = por %p101, %p102
      %p104 = scmp.ne.s32.totalorder %s96, %s99
      %p105 = scmp.eq.s32.totalorder %s13, 0
      %p106 = por %p104, %p105
      %p107 = scmp.ne.s32.totalorder %s96, %s99
      %p108 = scmp.eq.s32.totalorder %s18, 7
      %p109 = por %p107, %p108
      %p110 = scmp.ne.s32.totalorder %s99, %s100
      %p111 = scmp.eq.s32.totalorder %s18, 0
      %p112 = por %p110, %p111
      %p113 = scmp.ne.s32.totalorder %s99, %s100
      %p114 = scmp.eq.s32.totalorder %s19, 7
      %p115 = por %p113, %p114
      %p117 = scmp.ne.s32.totalorder %s100, %s116
      %p118 = scmp.eq.s32.totalorder %s19, 0
      %p119 = por %p117, %p118
      %s120 = ssub.s32 %s21, %s35
      %p121 = scmp.eq.s32.totalorder %s120, 0
      %s123 = sadd.s32 %s122, 1
      %s124 = scalar_select %p121, %s122, %s123
      %p127 = pneg %p121
      %p128 = scmp.eq.s32.totalorder %s13, 7
      %p129 = por %p127, %p128
      %p130 = scmp.ne.s32.totalorder %s122, %s125
      %p131 = scmp.eq.s32.totalorder %s13, 0
      %p132 = por %p130, %p131
      %p133 = scmp.ne.s32.totalorder %s122, %s125
      %p134 = scmp.eq.s32.totalorder %s18, 7
      %p135 = por %p133, %p134
      %p136 = scmp.ne.s32.totalorder %s125, %s126
      %p137 = scmp.eq.s32.totalorder %s18, 0
      %p138 = por %p136, %p137
      %p139 = scmp.ne.s32.totalorder %s125, %s126
      %p140 = scmp.eq.s32.totalorder %s19, 7
      %p141 = por %p139, %p140
      %p143 = scmp.ne.s32.totalorder %s126, %s142
      %p144 = scmp.eq.s32.totalorder %s19, 0
      %p145 = por %p143, %p144
      %s146 = ssub.s32 %s20, %s39
      %s147 = ssub.s32 %s21, %s35
      %s148 = sor.u32 %s146, %s147
      %p149 = scmp.eq.s32.totalorder %s148, 0
      %s151 = sadd.s32 %s150, 1
      %s152 = scalar_select %p149, %s150, %s151
      %p155 = pneg %p149
      %p156 = scmp.eq.s32.totalorder %s13, 7
      %p157 = por %p155, %p156
      %p158 = scmp.ne.s32.totalorder %s150, %s153
      %p159 = scmp.eq.s32.totalorder %s13, 0
      %p160 = por %p158, %p159
      %p161 = scmp.ne.s32.totalorder %s150, %s153
      %p162 = scmp.eq.s32.totalorder %s18, 7
      %p163 = por %p161, %p162
      %p164 = scmp.ne.s32.totalorder %s153, %s154
      %p165 = scmp.eq.s32.totalorder %s18, 0
      %p166 = por %p164, %p165
      %p167 = scmp.ne.s32.totalorder %s153, %s154
      %p168 = scmp.eq.s32.totalorder %s19, 7
      %p169 = por %p167, %p168
      %p171 = scmp.ne.s32.totalorder %s154, %s170
      %p172 = scmp.eq.s32.totalorder %s19, 0
      %p173 = por %p171, %p172
      %p174 = scmp.le.s32.totalorder 1, %s13
      %p175 = scmp.lt.s32.totalorder %s13, 9
      %p176 = pnand %p174, %p175
      %p177 = pneg %p176
      // Predicated region
      $region9: #{tpu_custom_call.1} parent=5 // pred_check
        _
      $region10: #{tpu_custom_call.1} parent=5 // pred_check_branch
        %179 = sbr.rel (%p176) target = $region12
      $region11: #{tpu_custom_call.1} parent=5 // pred_region
        %s180 = ssub.s32 %s13, 1
      $region12: #{tpu_custom_call.1} parent=5 // pred_fallthru
        _
      %p181 = scmp.lt.s32.totalorder %s13, 8
      // Predicated region
      $region13: #{tpu_custom_call.1} parent=5 // pred_check
        %p182 = pneg %p181
      $region14: #{tpu_custom_call.1} parent=5 // pred_check_branch
        %184 = sbr.rel (%p182) target = $region16
      $region15: #{tpu_custom_call.1} parent=5 // pred_region
        // Predicated region
        $region17: #{tpu_custom_call.1} parent=15 // pred_check
          %p185 = pneg %p54
        $region18: #{tpu_custom_call.1} parent=15 // pred_check_branch
          %187 = sbr.rel (%p185) target = $region20
        $region19: #{tpu_custom_call.1} parent=15 // pred_region
          %s188 = smul.u32 8, %s22
          %p189 = scmp.lt.s32.totalorder %s20, 1
          %s190 = scalar_select %p189, %s20, 1
          %p191 = scmp.lt.s32.totalorder %s188, 15
          %s192 = scalar_select %p191, %s188, 15
          %s193 = smul.addr %s190, 16
          %s194 = sadd.s32 %s192, %s193
          %s195 = smul.addr %s194, 8
          %s196 = scalar_lea.vmem %s0, %s195
          %s197 = smul.u32 8, %s22
        $region20: #{tpu_custom_call.1} parent=15 // pred_fallthru
          _
        // Predicated region
        $region21: #{tpu_custom_call.1} parent=15 // pred_check
          %p198 = pneg %p80
        $region22: #{tpu_custom_call.1} parent=15 // pred_check_branch
          %200 = sbr.rel (%p198) target = $region24
        $region23: #{tpu_custom_call.1} parent=15 // pred_region
          %s201 = smul.u32 8, %s21
          %p202 = scmp.lt.s32.totalorder %s201, 15
          %s203 = scalar_select %p202, %s201, 15
          %s204 = smul.addr %s203, 8
          %s205 = scalar_lea.vmem %s1, %s204
          %s206 = smul.u32 8, %s21
        $region24: #{tpu_custom_call.1} parent=15 // pred_fallthru
          _
        // Predicated region
        $region25: #{tpu_custom_call.1} parent=15 // pred_check
          %p207 = pneg %p106
        $region26: #{tpu_custom_call.1} parent=15 // pred_check_branch
          %209 = sbr.rel (%p207) target = $region28
        $region27: #{tpu_custom_call.1} parent=15 // pred_region
          %s210 = smul.u32 8, %s21
          %p211 = scmp.lt.s32.totalorder %s210, 15
          %s212 = scalar_select %p211, %s210, 15
          %s213 = scalar_lea.vmem %s2, %s212
          %s214 = smul.u32 8, %s21
        $region28: #{tpu_custom_call.1} parent=15 // pred_fallthru
          _
        // Predicated region
        $region29: #{tpu_custom_call.1} parent=15 // pred_check
          %p215 = pneg %p132
        $region30: #{tpu_custom_call.1} parent=15 // pred_check_branch
          %217 = sbr.rel (%p215) target = $region32
        $region31: #{tpu_custom_call.1} parent=15 // pred_region
          %s218 = smul.u32 8, %s21
          %p219 = scmp.lt.s32.totalorder %s218, 15
          %s220 = scalar_select %p219, %s218, 15
          %s221 = scalar_lea.vmem %s3, %s220
          %s222 = smul.u32 8, %s21
        $region32: #{tpu_custom_call.1} parent=15 // pred_fallthru
          _
      $region16: #{tpu_custom_call.1} parent=5 // pred_fallthru
        _
      %p223 = scmp.le.s32.totalorder 1, %s13
      %p224 = scmp.lt.s32.totalorder %s13, 9
      %p225 = pnand %p223, %p224
      %p226 = pneg %p225
      // Predicated region
      $region33: #{tpu_custom_call.1} parent=5 // pred_check
        _
      $region34: #{tpu_custom_call.1} parent=5 // pred_check_branch
        %228 = sbr.rel (%p225) target = $region36
      $region35: #{tpu_custom_call.1} parent=5 // pred_region
        %s229 = ssub.s32 %s13, 1
        %s230 = smul.u32 8, %s25
        %p231 = scmp.lt.s32.totalorder %s23, 1
        %s232 = scalar_select %p231, %s23, 1
        %p233 = scmp.lt.s32.totalorder %s230, 15
        %s234 = scalar_select %p233, %s230, 15
        %s235 = smul.addr %s232, 16
        %s236 = sadd.s32 %s234, %s235
        %s237 = smul.addr %s236, 8
        %s238 = scalar_lea.vmem %s0, %s237
        %p239 = pneg %p60
        %p240 = pneg %p57
        %s241 = smul.u32 8, %s24
        %p242 = scmp.lt.s32.totalorder %s241, 15
        %s243 = scalar_select %p242, %s241, 15
        %s244 = smul.addr %s243, 8
        %s245 = scalar_lea.vmem %s1, %s244
        %p246 = pneg %p86
        %p247 = pneg %p83
        %s248 = smul.u32 8, %s24
        %p249 = scmp.lt.s32.totalorder %s248, 15
        %s250 = scalar_select %p249, %s248, 15
        %s251 = scalar_lea.vmem %s2, %s250
        %p252 = pneg %p112
        %p253 = pneg %p109
        %s254 = smul.u32 8, %s24
        %p255 = scmp.lt.s32.totalorder %s254, 15
        %s256 = scalar_select %p255, %s254, 15
        %s257 = scalar_lea.vmem %s3, %s256
        %p258 = pneg %p138
        %p259 = pneg %p135
        %p260 = pneg %p166
        %p261 = pneg %p163
        %s262 = sand.u32 %s153, 1
        %s263 = scalar_lea.sflag [#allocation4], %s262
        %s264 = sand.u32 %s153, 1
        %s265 = smul.addr %s264, 8
        %s266 = scalar_lea.vmem [#allocation3], %s265
        %s267 = smul.u32 8, %s25
        %p268 = scmp.lt.s32.totalorder %s23, 1
        %s269 = scalar_select %p268, %s23, 1
        %p270 = scmp.lt.s32.totalorder %s267, 15
        %s271 = scalar_select %p270, %s267, 15
        %s272 = smul.addr %s269, 16
        %s273 = sadd.s32 %s271, %s272
        %s274 = smul.addr %s273, 8
        %s275 = scalar_lea.vmem %s0, %s274
        %s276 = smul.u32 8, %s25
        %s277 = smul.u32 8, %s24
        %p278 = scmp.lt.s32.totalorder %s277, 15
        %s279 = scalar_select %p278, %s277, 15
        %s280 = smul.addr %s279, 8
        %s281 = scalar_lea.vmem %s1, %s280
        %s282 = smul.u32 8, %s24
        %s283 = smul.u32 8, %s24
        %p284 = scmp.lt.s32.totalorder %s283, 15
        %s285 = scalar_select %p284, %s283, 15
        %s286 = scalar_lea.vmem %s2, %s285
        %s287 = smul.u32 8, %s24
        %s288 = smul.u32 8, %s24
        %p289 = scmp.lt.s32.totalorder %s288, 15
        %s290 = scalar_select %p289, %s288, 15
        %s291 = scalar_lea.vmem %s3, %s290
        %s292 = smul.u32 8, %s24
        %s293 = smul.u32 8, %s24
        %p294 = scmp.eq.s32.totalorder %s25, 0
        // Predicated region
        $region37: #{tpu_custom_call.1} parent=35 // pred_check
          %p295 = pneg %p294
        $region38: #{tpu_custom_call.1} parent=35 // pred_check_branch
          %297 = sbr.rel (%p295) target = $region40
        $region39: #{tpu_custom_call.1} parent=35 // pred_region
          %298 = vst [vmem:[#allocation2] sm:$0xff] 0.0
          %299 = vst [vmem:[#allocation2 + $0x8] sm:$0xff] 0.0
          %300 = vst [vmem:[#allocation2 + $0x10] sm:$0xff] 0.0
          %301 = vst [vmem:[#allocation2 + $0x18] sm:$0xff] 0.0
          %302 = vst [vmem:[#allocation2 + $0x20] sm:$0xff] 0.0
          %303 = vst [vmem:[#allocation2 + $0x28] sm:$0xff] 0.0
          %304 = vst [vmem:[#allocation2 + $0x30] sm:$0xff] 0.0
          %305 = vst [vmem:[#allocation2 + $0x38] sm:$0xff] 0.0
        $region40: #{tpu_custom_call.1} parent=35 // pred_fallthru
          _
        %v306 = vld [vmem:[%s275] sm:$0xff]
        %v307 = vld [vmem:[%s275 + $0x8] sm:$0xff]
        %v308 = vld [vmem:[%s275 + $0x10] sm:$0xff]
        %v309 = vld [vmem:[%s275 + $0x18] sm:$0xff]
        %v310 = vld [vmem:[%s275 + $0x20] sm:$0xff]
        %v311 = vld [vmem:[%s275 + $0x28] sm:$0xff]
        %v312 = vld [vmem:[%s275 + $0x30] sm:$0xff]
        %v313 = vld [vmem:[%s275 + $0x38] sm:$0xff]
        %v314 = vld [vmem:[%s281] sm:$0x1f]
        %v315 = vld [vmem:[%s281 + $0x8] sm:$0x1f]
        %v316 = vld [vmem:[%s281 + $0x10] sm:$0x1f]
        %v317 = vld [vmem:[%s281 + $0x18] sm:$0x1f]
        %v318 = vld [vmem:[%s281 + $0x20] sm:$0x1f]
        %v319 = vld [vmem:[%s281 + $0x28] sm:$0x1f]
        %v320 = vld [vmem:[%s281 + $0x30] sm:$0x1f]
        %v321 = vld [vmem:[%s281 + $0x38] sm:$0x1f]
        %vm322 = vcmask 39936
        %v324 = vsel %vm322, %v306, 0
        %v327 = vsel %vm322, %v307, 0
        %v330 = vsel %vm322, %v308, 0
        %v333 = vsel %vm322, %v309, 0
        %v336 = vsel %vm322, %v310, 0
        %v339 = vsel %vm322, %v311, 0
        %v342 = vsel %vm322, %v312, 0
        %v345 = vsel %vm322, %v313, 0
        %vm347 = vcmask 1044480
        %v349 = vsel %vm347, %v314, 0
        %v352 = vsel %vm347, %v315, 0
        %v355 = vsel %vm347, %v316, 0
        %v358 = vsel %vm347, %v317, 0
        %v361 = vsel %vm347, %v318, 0
        %v364 = vsel %vm347, %v319, 0
        %v367 = vsel %vm347, %v320, 0
        %v370 = vsel %vm347, %v321, 0
        %372 = vmatprep.subr.mxu0 %v352
        %373 = vmatpush1.msra.mxu0 %v349
        %374 = vmatprep.subr.mxu0 0.0
        %375 = vmatpush1.msra.mxu0 0.0
        %376 = vmatprep.subr.mxu0 0.0
        %377 = vmatpush1.msra.mxu0 0.0
        %378 = vmatprep.subr.mxu0 0.0
        %379 = vmatpush1.msra.mxu0 0.0
        %380 = vmatprep.subr.mxu0 0.0
        %381 = vmatpush1.msra.mxu0 0.0
        %382 = vmatprep.subr.mxu0 0.0
        %383 = vmatpush1.msra.mxu0 0.0
        %384 = vmatprep.subr.mxu0 0.0
        %385 = vmatpush1.msra.mxu0 0.0
        %386 = vmatprep.subr.mxu0 0.0
        %387 = vmatpush1.msra.mxu0 0.0
        %388 = vmatprep.subr.mxu0 0.0
        %389 = vmatpush1.msra.mxu0 0.0
        %390 = vmatprep.subr.mxu0 0.0
        %391 = vmatpush1.msra.mxu0 0.0
        %392 = vmatprep.subr.mxu0 0.0
        %393 = vmatpush1.msra.mxu0 0.0
        %394 = vmatprep.subr.mxu0 0.0
        %395 = vmatpush1.msra.mxu0 0.0
        %396 = vmatprep.subr.mxu0 0.0
        %397 = vmatpush1.msra.mxu0 0.0
        %398 = vmatprep.subr.mxu0 0.0
        %399 = vmatpush1.msra.mxu0 0.0
        %400 = vmatprep.subr.mxu0 0.0
        %401 = vmatpush1.msra.mxu0 0.0
        %402 = vmatprep.subr.mxu0 0.0
        %403 = vmatpush1.msra.mxu0 0.0
        %404 = vmatprep.subr.mxu0 0.0
        %405 = vmatpush1.msra.mxu0 0.0
        %406 = vmatprep.subr.mxu0 0.0
        %407 = vmatpush1.msra.mxu0 0.0
        %408 = vmatprep.subr.mxu0 0.0
        %409 = vmatpush1.msra.mxu0 0.0
        %410 = vmatprep.subr.mxu0 0.0
        %411 = vmatpush1.msra.mxu0 0.0
        %412 = vmatprep.subr.mxu0 0.0
        %413 = vmatpush1.msra.mxu0 0.0
        %414 = vmatprep.subr.mxu0 0.0
        %415 = vmatpush1.msra.mxu0 0.0
        %416 = vmatprep.subr.mxu0 0.0
        %417 = vmatpush1.msra.mxu0 0.0
        %418 = vmatprep.subr.mxu0 0.0
        %419 = vmatpush1.msra.mxu0 0.0
        %420 = vmatprep.subr.mxu0 0.0
        %421 = vmatpush1.msra.mxu0 0.0
        %422 = vmatprep.subr.mxu0 0.0
        %423 = vmatpush1.msra.mxu0 0.0
        %424 = vmatprep.subr.mxu0 0.0
        %425 = vmatpush1.msra.mxu0 0.0
        %426 = vmatprep.subr.mxu0 0.0
        %427 = vmatpush1.msra.mxu0 0.0
        %428 = vmatprep.subr.mxu0 0.0
        %429 = vmatpush1.msra.mxu0 0.0
        %430 = vmatprep.subr.mxu0 0.0
        %431 = vmatpush1.msra.mxu0 0.0
        %432 = vmatprep.subr.mxu0 0.0
        %433 = vmatpush1.msra.mxu0 0.0
        %434 = vmatprep.subr.mxu0 0.0
        %435 = vmatpush1.msra.mxu0 0.0
        %436 = vmatprep.mubr.f32.mxu0 0.0
        %437 = vmatmul.mubr.f32.gmra.mrb[0].mxu0 %v324
        %v438 = vpop.f32.mrb[0].mxu0
        %v439 = vadd.f32 0.0, %v438
        %v440 = vpop.f32.mrb[0].mxu0
        %v441 = vadd.f32 0.0, %v440
        %442 = vmatprep.mubr.f32.mxu0 0.0
        %443 = vmatmul.mubr.f32.gmra.mrb[0].mxu0 %v327
        %v444 = vpop.f32.mrb[0].mxu0
        %v445 = vadd.f32 0.0, %v444
        %v446 = vpop.f32.mrb[0].mxu0
        %v447 = vadd.f32 0.0, %v446
        %448 = vmatprep.mubr.f32.mxu0 0.0
        %449 = vmatmul.mubr.f32.gmra.mrb[0].mxu0 %v330
        %v450 = vpop.f32.mrb[0].mxu0
        %v451 = vadd.f32 0.0, %v450
        %v452 = vpop.f32.mrb[0].mxu0
        %v453 = vadd.f32 0.0, %v452
        %454 = vmatprep.mubr.f32.mxu0 0.0
        %455 = vmatmul.mubr.f32.gmra.mrb[0].mxu0 %v333
        %v456 = vpop.f32.mrb[0].mxu0
        %v457 = vadd.f32 0.0, %v456
        %v458 = vpop.f32.mrb[0].mxu0
        %v459 = vadd.f32 0.0, %v458
        %460 = vmatprep.mubr.f32.mxu0 0.0
        %461 = vmatmul.mubr.f32.gmra.mrb[0].mxu0 %v336
        %v462 = vpop.f32.mrb[0].mxu0
        %v463 = vadd.f32 0.0, %v462
        %v464 = vpop.f32.mrb[0].mxu0
        %v465 = vadd.f32 0.0, %v464
        %466 = vmatprep.mubr.f32.mxu0 0.0
        %467 = vmatmul.mubr.f32.gmra.mrb[0].mxu0 %v339
        %v468 = vpop.f32.mrb[0].mxu0
        %v469 = vadd.f32 0.0, %v468
        %v470 = vpop.f32.mrb[0].mxu0
        %v471 = vadd.f32 0.0, %v470
        %472 = vmatprep.mubr.f32.mxu0 0.0
        %473 = vmatmul.mubr.f32.gmra.mrb[0].mxu0 %v342
        %v474 = vpop.f32.mrb[0].mxu0
        %v475 = vadd.f32 0.0, %v474
        %v476 = vpop.f32.mrb[0].mxu0
        %v477 = vadd.f32 0.0, %v476
        %478 = vmatprep.mubr.f32.mxu0 0.0
        %479 = vmatmul.mubr.f32.gmra.mrb[0].mxu0 %v345
        %v480 = vpop.f32.mrb[0].mxu0
        %v481 = vadd.f32 0.0, %v480
        %v482 = vpop.f32.mrb[0].mxu0
        %v483 = vadd.f32 0.0, %v482
        %484 = vdwg.mxu0
        %485 = vmatprep.subr.mxu0 %v358
        %486 = vmatpush1.msra.mxu0 %v355
        %487 = vmatprep.subr.mxu0 0.0
        %488 = vmatpush1.msra.mxu0 0.0
        %489 = vmatprep.subr.mxu0 0.0
        %490 = vmatpush1.msra.mxu0 0.0
        %491 = vmatprep.subr.mxu0 0.0
        %492 = vmatpush1.msra.mxu0 0.0
        %493 = vmatprep.subr.mxu0 0.0
        %494 = vmatpush1.msra.mxu0 0.0
        %495 = vmatprep.subr.mxu0 0.0
        %496 = vmatpush1.msra.mxu0 0.0
        %497 = vmatprep.subr.mxu0 0.0
        %498 = vmatpush1.msra.mxu0 0.0
        %499 = vmatprep.subr.mxu0 0.0
        %500 = vmatpush1.msra.mxu0 0.0
        %501 = vmatprep.subr.mxu0 0.0
        %502 = vmatpush1.msra.mxu0 0.0
        %503 = vmatprep.subr.mxu0 0.0
        %504 = vmatpush1.msra.mxu0 0.0
        %505 = vmatprep.subr.mxu0 0.0
        %506 = vmatpush1.msra.mxu0 0.0
        %507 = vmatprep.subr.mxu0 0.0
        %508 = vmatpush1.msra.mxu0 0.0
        %509 = vmatprep.subr.mxu0 0.0
        %510 = vmatpush1.msra.mxu0 0.0
        %511 = vmatprep.subr.mxu0 0.0
        %512 = vmatpush1.msra.mxu0 0.0
        %513 = vmatprep.subr.mxu0 0.0
        %514 = vmatpush1.msra.mxu0 0.0
        %515 = vmatprep.subr.mxu0 0.0
        %516 = vmatpush1.msra.mxu0 0.0
        %517 = vmatprep.subr.mxu0 0.0
        %518 = vmatpush1.msra.mxu0 0.0
        %519 = vmatprep.subr.mxu0 0.0
        %520 = vmatpush1.msra.mxu0 0.0
        %521 = vmatprep.subr.mxu0 0.0
        %522 = vmatpush1.msra.mxu0 0.0
        %523 = vmatprep.subr.mxu0 0.0
        %524 = vmatpush1.msra.mxu0 0.0
        %525 = vmatprep.subr.mxu0 0.0
        %526 = vmatpush1.msra.mxu0 0.0
        %527 = vmatprep.subr.mxu0 0.0
        %528 = vmatpush1.msra.mxu0 0.0
        %529 = vmatprep.subr.mxu0 0.0
        %530 = vmatpush1.msra.mxu0 0.0
        %531 = vmatprep.subr.mxu0 0.0
        %532 = vmatpush1.msra.mxu0 0.0
        %533 = vmatprep.subr.mxu0 0.0
        %534 = vmatpush1.msra.mxu0 0.0
        %535 = vmatprep.subr.mxu0 0.0
        %536 = vmatpush1.msra.mxu0 0.0
        %537 = vmatprep.subr.mxu0 0.0
        %538 = vmatpush1.msra.mxu0 0.0
        %539 = vmatprep.subr.mxu0 0.0
        %540 = vmatpush1.msra.mxu0 0.0
        %541 = vmatprep.subr.mxu0 0.0
        %542 = vmatpush1.msra.mxu0 0.0
        %543 = vmatprep.subr.mxu0 0.0
        %544 = vmatpush1.msra.mxu0 0.0
        %545 = vmatprep.subr.mxu0 0.0
        %546 = vmatpush1.msra.mxu0 0.0
        %547 = vmatprep.subr.mxu0 0.0
        %548 = vmatpush1.msra.mxu0 0.0
        %549 = vmatprep.mubr.f32.mxu0 0.0
        %550 = vmatmul.mubr.f32.gmra.mrb[0].mxu0 %v324
        %v551 = vpop.f32.mrb[0].mxu0
        %v552 = vadd.f32 0.0, %v551
        %v553 = vpop.f32.mrb[0].mxu0
        %v554 = vadd.f32 0.0, %v553
        %555 = vmatprep.mubr.f32.mxu0 0.0
        %556 = vmatmul.mubr.f32.gmra.mrb[0].mxu0 %v327
        %v557 = vpop.f32.mrb[0].mxu0
        %v558 = vadd.f32 0.0, %v557
        %v559 = vpop.f32.mrb[0].mxu0
        %v560 = vadd.f32 0.0, %v559
        %561 = vmatprep.mubr.f32.mxu0 0.0
        %562 = vmatmul.mubr.f32.gmra.mrb[0].mxu0 %v330
        %v563 = vpop.f32.mrb[0].mxu0
        %v564 = vadd.f32 0.0, %v563
        %v565 = vpop.f32.mrb[0].mxu0
        %v566 = vadd.f32 0.0, %v565
        %567 = vmatprep.mubr.f32.mxu0 0.0
        %568 = vmatmul.mubr.f32.gmra.mrb[0].mxu0 %v333
        %v569 = vpop.f32.mrb[0].mxu0
        %v570 = vadd.f32 0.0, %v569
        %v571 = vpop.f32.mrb[0].mxu0
        %v572 = vadd.f32 0.0, %v571
        %573 = vmatprep.mubr.f32.mxu0 0.0
        %574 = vmatmul.mubr.f32.gmra.mrb[0].mxu0 %v336
        %v575 = vpop.f32.mrb[0].mxu0
        %v576 = vadd.f32 0.0, %v575
        %v577 = vpop.f32.mrb[0].mxu0
        %v578 = vadd.f32 0.0, %v577
        %579 = vmatprep.mubr.f32.mxu0 0.0
        %580 = vmatmul.mubr.f32.gmra.mrb[0].mxu0 %v339
        %v581 = vpop.f32.mrb[0].mxu0
        %v582 = vadd.f32 0.0, %v581
        %v583 = vpop.f32.mrb[0].mxu0
        %v584 = vadd.f32 0.0, %v583
        %585 = vmatprep.mubr.f32.mxu0 0.0
        %586 = vmatmul.mubr.f32.gmra.mrb[0].mxu0 %v342
        %v587 = vpop.f32.mrb[0].mxu0
        %v588 = vadd.f32 0.0, %v587
        %v589 = vpop.f32.mrb[0].mxu0
        %v590 = vadd.f32 0.0, %v589
        %591 = vmatprep.mubr.f32.mxu0 0.0
        %592 = vmatmul.mubr.f32.gmra.mrb[0].mxu0 %v345
        %v593 = vpop.f32.mrb[0].mxu0
        %v594 = vadd.f32 0.0, %v593
        %v595 = vpop.f32.mrb[0].mxu0
        %v596 = vadd.f32 0.0, %v595
        %597 = vdwg.mxu0
        %598 = vmatprep.subr.mxu0 %v364
        %599 = vmatpush1.msra.mxu0 %v361
        %600 = vmatprep.subr.mxu0 0.0
        %601 = vmatpush1.msra.mxu0 0.0
        %602 = vmatprep.subr.mxu0 0.0
        %603 = vmatpush1.msra.mxu0 0.0
        %604 = vmatprep.subr.mxu0 0.0
        %605 = vmatpush1.msra.mxu0 0.0
        %606 = vmatprep.subr.mxu0 0.0
        %607 = vmatpush1.msra.mxu0 0.0
        %608 = vmatprep.subr.mxu0 0.0
        %609 = vmatpush1.msra.mxu0 0.0
        %610 = vmatprep.subr.mxu0 0.0
        %611 = vmatpush1.msra.mxu0 0.0
        %612 = vmatprep.subr.mxu0 0.0
        %613 = vmatpush1.msra.mxu0 0.0
        %614 = vmatprep.subr.mxu0 0.0
        %615 = vmatpush1.msra.mxu0 0.0
        %616 = vmatprep.subr.mxu0 0.0
        %617 = vmatpush1.msra.mxu0 0.0
        %618 = vmatprep.subr.mxu0 0.0
        %619 = vmatpush1.msra.mxu0 0.0
        %620 = vmatprep.subr.mxu0 0.0
        %621 = vmatpush1.msra.mxu0 0.0
        %622 = vmatprep.subr.mxu0 0.0
        %623 = vmatpush1.msra.mxu0 0.0
        %624 = vmatprep.subr.mxu0 0.0
        %625 = vmatpush1.msra.mxu0 0.0
        %626 = vmatprep.subr.mxu0 0.0
        %627 = vmatpush1.msra.mxu0 0.0
        %628 = vmatprep.subr.mxu0 0.0
        %629 = vmatpush1.msra.mxu0 0.0
        %630 = vmatprep.subr.mxu0 0.0
        %631 = vmatpush1.msra.mxu0 0.0
        %632 = vmatprep.subr.mxu0 0.0
        %633 = vmatpush1.msra.mxu0 0.0
        %634 = vmatprep.subr.mxu0 0.0
        %635 = vmatpush1.msra.mxu0 0.0
        %636 = vmatprep.subr.mxu0 0.0
        %637 = vmatpush1.msra.mxu0 0.0
        %638 = vmatprep.subr.mxu0 0.0
        %639 = vmatpush1.msra.mxu0 0.0
        %640 = vmatprep.subr.mxu0 0.0
        %641 = vmatpush1.msra.mxu0 0.0
        %642 = vmatprep.subr.mxu0 0.0
        %643 = vmatpush1.msra.mxu0 0.0
        %644 = vmatprep.subr.mxu0 0.0
        %645 = vmatpush1.msra.mxu0 0.0
        %646 = vmatprep.subr.mxu0 0.0
        %647 = vmatpush1.msra.mxu0 0.0
        %648 = vmatprep.subr.mxu0 0.0
        %649 = vmatpush1.msra.mxu0 0.0
        %650 = vmatprep.subr.mxu0 0.0
        %651 = vmatpush1.msra.mxu0 0.0
        %652 = vmatprep.subr.mxu0 0.0
        %653 = vmatpush1.msra.mxu0 0.0
        %654 = vmatprep.subr.mxu0 0.0
        %655 = vmatpush1.msra.mxu0 0.0
        %656 = vmatprep.subr.mxu0 0.0
        %657 = vmatpush1.msra.mxu0 0.0
        %658 = vmatprep.subr.mxu0 0.0
        %659 = vmatpush1.msra.mxu0 0.0
        %660 = vmatprep.subr.mxu0 0.0
        %661 = vmatpush1.msra.mxu0 0.0
        %662 = vmatprep.mubr.f32.mxu0 0.0
        %663 = vmatmul.mubr.f32.gmra.mrb[0].mxu0 %v324
        %v664 = vpop.f32.mrb[0].mxu0
        %v665 = vadd.f32 0.0, %v664
        %v666 = vpop.f32.mrb[0].mxu0
        %v667 = vadd.f32 0.0, %v666
        %668 = vmatprep.mubr.f32.mxu0 0.0
        %669 = vmatmul.mubr.f32.gmra.mrb[0].mxu0 %v327
        %v670 = vpop.f32.mrb[0].mxu0
        %v671 = vadd.f32 0.0, %v670
        %v672 = vpop.f32.mrb[0].mxu0
        %v673 = vadd.f32 0.0, %v672
        %674 = vmatprep.mubr.f32.mxu0 0.0
        %675 = vmatmul.mubr.f32.gmra.mrb[0].mxu0 %v330
        %v676 = vpop.f32.mrb[0].mxu0
        %v677 = vadd.f32 0.0, %v676
        %v678 = vpop.f32.mrb[0].mxu0
        %v679 = vadd.f32 0.0, %v678
        %680 = vmatprep.mubr.f32.mxu0 0.0
        %681 = vmatmul.mubr.f32.gmra.mrb[0].mxu0 %v333
        %v682 = vpop.f32.mrb[0].mxu0
        %v683 = vadd.f32 0.0, %v682
        %v684 = vpop.f32.mrb[0].mxu0
        %v685 = vadd.f32 0.0, %v684
        %686 = vmatprep.mubr.f32.mxu0 0.0
        %687 = vmatmul.mubr.f32.gmra.mrb[0].mxu0 %v336
        %v688 = vpop.f32.mrb[0].mxu0
        %v689 = vadd.f32 0.0, %v688
        %v690 = vpop.f32.mrb[0].mxu0
        %v691 = vadd.f32 0.0, %v690
        %692 = vmatprep.mubr.f32.mxu0 0.0
        %693 = vmatmul.mubr.f32.gmra.mrb[0].mxu0 %v339
        %v694 = vpop.f32.mrb[0].mxu0
        %v695 = vadd.f32 0.0, %v694
        %v696 = vpop.f32.mrb[0].mxu0
        %v697 = vadd.f32 0.0, %v696
        %698 = vmatprep.mubr.f32.mxu0 0.0
        %699 = vmatmul.mubr.f32.gmra.mrb[0].mxu0 %v342
        %v700 = vpop.f32.mrb[0].mxu0
        %v701 = vadd.f32 0.0, %v700
        %v702 = vpop.f32.mrb[0].mxu0
        %v703 = vadd.f32 0.0, %v702
        %704 = vmatprep.mubr.f32.mxu0 0.0
        %705 = vmatmul.mubr.f32.gmra.mrb[0].mxu0 %v345
        %v706 = vpop.f32.mrb[0].mxu0
        %v707 = vadd.f32 0.0, %v706
        %v708 = vpop.f32.mrb[0].mxu0
        %v709 = vadd.f32 0.0, %v708
        %710 = vdwg.mxu0
        %711 = vmatprep.subr.mxu0 %v370
        %712 = vmatpush1.msra.mxu0 %v367
        %713 = vmatprep.subr.mxu0 0.0
        %714 = vmatpush1.msra.mxu0 0.0
        %715 = vmatprep.subr.mxu0 0.0
        %716 = vmatpush1.msra.mxu0 0.0
        %717 = vmatprep.subr.mxu0 0.0
        %718 = vmatpush1.msra.mxu0 0.0
        %719 = vmatprep.subr.mxu0 0.0
        %720 = vmatpush1.msra.mxu0 0.0
        %721 = vmatprep.subr.mxu0 0.0
        %722 = vmatpush1.msra.mxu0 0.0
        %723 = vmatprep.subr.mxu0 0.0
        %724 = vmatpush1.msra.mxu0 0.0
        %725 = vmatprep.subr.mxu0 0.0
        %726 = vmatpush1.msra.mxu0 0.0
        %727 = vmatprep.subr.mxu0 0.0
        %728 = vmatpush1.msra.mxu0 0.0
        %729 = vmatprep.subr.mxu0 0.0
        %730 = vmatpush1.msra.mxu0 0.0
        %731 = vmatprep.subr.mxu0 0.0
        %732 = vmatpush1.msra.mxu0 0.0
        %733 = vmatprep.subr.mxu0 0.0
        %734 = vmatpush1.msra.mxu0 0.0
        %735 = vmatprep.subr.mxu0 0.0
        %736 = vmatpush1.msra.mxu0 0.0
        %737 = vmatprep.subr.mxu0 0.0
        %738 = vmatpush1.msra.mxu0 0.0
        %739 = vmatprep.subr.mxu0 0.0
        %740 = vmatpush1.msra.mxu0 0.0
        %741 = vmatprep.subr.mxu0 0.0
        %742 = vmatpush1.msra.mxu0 0.0
        %743 = vmatprep.subr.mxu0 0.0
        %744 = vmatpush1.msra.mxu0 0.0
        %745 = vmatprep.subr.mxu0 0.0
        %746 = vmatpush1.msra.mxu0 0.0
        %747 = vmatprep.subr.mxu0 0.0
        %748 = vmatpush1.msra.mxu0 0.0
        %749 = vmatprep.subr.mxu0 0.0
        %750 = vmatpush1.msra.mxu0 0.0
        %751 = vmatprep.subr.mxu0 0.0
        %752 = vmatpush1.msra.mxu0 0.0
        %753 = vmatprep.subr.mxu0 0.0
        %754 = vmatpush1.msra.mxu0 0.0
        %755 = vmatprep.subr.mxu0 0.0
        %756 = vmatpush1.msra.mxu0 0.0
        %757 = vmatprep.subr.mxu0 0.0
        %758 = vmatpush1.msra.mxu0 0.0
        %759 = vmatprep.subr.mxu0 0.0
        %760 = vmatpush1.msra.mxu0 0.0
        %761 = vmatprep.subr.mxu0 0.0
        %762 = vmatpush1.msra.mxu0 0.0
        %763 = vmatprep.subr.mxu0 0.0
        %764 = vmatpush1.msra.mxu0 0.0
        %765 = vmatprep.subr.mxu0 0.0
        %766 = vmatpush1.msra.mxu0 0.0
        %767 = vmatprep.subr.mxu0 0.0
        %768 = vmatpush1.msra.mxu0 0.0
        %769 = vmatprep.subr.mxu0 0.0
        %770 = vmatpush1.msra.mxu0 0.0
        %771 = vmatprep.subr.mxu0 0.0
        %772 = vmatpush1.msra.mxu0 0.0
        %773 = vmatprep.subr.mxu0 0.0
        %774 = vmatpush1.msra.mxu0 0.0
        %775 = vmatprep.mubr.f32.mxu0 0.0
        %776 = vmatmul.mubr.f32.gmra.mrb[0].mxu0 %v324
        %v777 = vpop.f32.mrb[0].mxu0
        %v778 = vadd.f32 0.0, %v777
        %v779 = vpop.f32.mrb[0].mxu0
        %v780 = vadd.f32 0.0, %v779
        %781 = vmatprep.mubr.f32.mxu0 0.0
        %782 = vmatmul.mubr.f32.gmra.mrb[0].mxu0 %v327
        %v783 = vpop.f32.mrb[0].mxu0
        %v784 = vadd.f32 0.0, %v783
        %v785 = vpop.f32.mrb[0].mxu0
        %v786 = vadd.f32 0.0, %v785
        %787 = vmatprep.mubr.f32.mxu0 0.0
        %788 = vmatmul.mubr.f32.gmra.mrb[0].mxu0 %v330
        %v789 = vpop.f32.mrb[0].mxu0
        %v790 = vadd.f32 0.0, %v789
        %v791 = vpop.f32.mrb[0].mxu0
        %v792 = vadd.f32 0.0, %v791
        %793 = vmatprep.mubr.f32.mxu0 0.0
        %794 = vmatmul.mubr.f32.gmra.mrb[0].mxu0 %v333
        %v795 = vpop.f32.mrb[0].mxu0
        %v796 = vadd.f32 0.0, %v795
        %v797 = vpop.f32.mrb[0].mxu0
        %v798 = vadd.f32 0.0, %v797
        %799 = vmatprep.mubr.f32.mxu0 0.0
        %800 = vmatmul.mubr.f32.gmra.mrb[0].mxu0 %v336
        %v801 = vpop.f32.mrb[0].mxu0
        %v802 = vadd.f32 0.0, %v801
        %v803 = vpop.f32.mrb[0].mxu0
        %v804 = vadd.f32 0.0, %v803
        %805 = vmatprep.mubr.f32.mxu0 0.0
        %806 = vmatmul.mubr.f32.gmra.mrb[0].mxu0 %v339
        %v807 = vpop.f32.mrb[0].mxu0
        %v808 = vadd.f32 0.0, %v807
        %v809 = vpop.f32.mrb[0].mxu0
        %v810 = vadd.f32 0.0, %v809
        %811 = vmatprep.mubr.f32.mxu0 0.0
        %812 = vmatmul.mubr.f32.gmra.mrb[0].mxu0 %v342
        %v813 = vpop.f32.mrb[0].mxu0
        %v814 = vadd.f32 0.0, %v813
        %v815 = vpop.f32.mrb[0].mxu0
        %v816 = vadd.f32 0.0, %v815
        %817 = vmatprep.mubr.f32.mxu0 0.0
        %818 = vmatmul.mubr.f32.gmra.mrb[0].mxu0 %v345
        %v819 = vpop.f32.mrb[0].mxu0
        %v820 = vadd.f32 0.0, %v819
        %v821 = vpop.f32.mrb[0].mxu0
        %v822 = vadd.f32 0.0, %v821
        %823 = vdwg.mxu0
        %v824 = vmax.f32 %v439, 1e-06
        %v825 = vmax.f32 %v441, 1e-06
        %v826 = vmax.f32 %v552, 1e-06
        %v827 = vmax.f32 %v554, 1e-06
        %v828 = vmax.f32 %v665, 1e-06
        %v829 = vmax.f32 %v667, 1e-06
        %v830 = vmax.f32 %v778, 1e-06
        %v831 = vmax.f32 %v780, 1e-06
        %v832 = vmax.f32 %v445, 1e-06
        %v833 = vmax.f32 %v447, 1e-06
        %v834 = vmax.f32 %v558, 1e-06
        %v835 = vmax.f32 %v560, 1e-06
        %v836 = vmax.f32 %v671, 1e-06
        %v837 = vmax.f32 %v673, 1e-06
        %v838 = vmax.f32 %v784, 1e-06
        %v839 = vmax.f32 %v786, 1e-06
        %v840 = vmax.f32 %v451, 1e-06
        %v841 = vmax.f32 %v453, 1e-06
        %v842 = vmax.f32 %v564, 1e-06
        %v843 = vmax.f32 %v566, 1e-06
        %v844 = vmax.f32 %v677, 1e-06
        %v845 = vmax.f32 %v679, 1e-06
        %v846 = vmax.f32 %v790, 1e-06
        %v847 = vmax.f32 %v792, 1e-06
        %v848 = vmax.f32 %v457, 1e-06
        %v849 = vmax.f32 %v459, 1e-06
        %v850 = vmax.f32 %v570, 1e-06
        %v851 = vmax.f32 %v572, 1e-06
        %v852 = vmax.f32 %v683, 1e-06
        %v853 = vmax.f32 %v685, 1e-06
        %v854 = vmax.f32 %v796, 1e-06
        %v855 = vmax.f32 %v798, 1e-06
        %v856 = vmax.f32 %v463, 1e-06
        %v857 = vmax.f32 %v465, 1e-06
        %v858 = vmax.f32 %v576, 1e-06
        %v859 = vmax.f32 %v578, 1e-06
        %v860 = vmax.f32 %v689, 1e-06
        %v861 = vmax.f32 %v691, 1e-06
        %v862 = vmax.f32 %v802, 1e-06
        %v863 = vmax.f32 %v804, 1e-06
        %v864 = vmax.f32 %v469, 1e-06
        %v865 = vmax.f32 %v471, 1e-06
        %v866 = vmax.f32 %v582, 1e-06
        %v867 = vmax.f32 %v584, 1e-06
        %v868 = vmax.f32 %v695, 1e-06
        %v869 = vmax.f32 %v697, 1e-06
        %v870 = vmax.f32 %v808, 1e-06
        %v871 = vmax.f32 %v810, 1e-06
        %v872 = vmax.f32 %v475, 1e-06
        %v873 = vmax.f32 %v477, 1e-06
        %v874 = vmax.f32 %v588, 1e-06
        %v875 = vmax.f32 %v590, 1e-06
        %v876 = vmax.f32 %v701, 1e-06
        %v877 = vmax.f32 %v703, 1e-06
        %v878 = vmax.f32 %v814, 1e-06
        %v879 = vmax.f32 %v816, 1e-06
        %v880 = vmax.f32 %v481, 1e-06
        %v881 = vmax.f32 %v483, 1e-06
        %v882 = vmax.f32 %v594, 1e-06
        %v883 = vmax.f32 %v596, 1e-06
        %v884 = vmax.f32 %v707, 1e-06
        %v885 = vmax.f32 %v709, 1e-06
        %v886 = vmax.f32 %v820, 1e-06
        %v887 = vmax.f32 %v822, 1e-06
        %v888 = vmul.f32 %v824, %v824
        %v889 = vmul.f32 %v825, %v825
        %v890 = vmul.f32 %v826, %v826
        %v891 = vmul.f32 %v827, %v827
        %v892 = vmul.f32 %v828, %v828
        %v893 = vmul.f32 %v829, %v829
        %v894 = vmul.f32 %v830, %v830
        %v895 = vmul.f32 %v831, %v831
        %v896 = vmul.f32 %v832, %v832
        %v897 = vmul.f32 %v833, %v833
        %v898 = vmul.f32 %v834, %v834
        %v899 = vmul.f32 %v835, %v835
        %v900 = vmul.f32 %v836, %v836
        %v901 = vmul.f32 %v837, %v837
        %v902 = vmul.f32 %v838, %v838
        %v903 = vmul.f32 %v839, %v839
        %v904 = vmul.f32 %v840, %v840
        %v905 = vmul.f32 %v841, %v841
        %v906 = vmul.f32 %v842, %v842
        %v907 = vmul.f32 %v843, %v843
        %v908 = vmul.f32 %v844, %v844
        %v909 = vmul.f32 %v845, %v845
        %v910 = vmul.f32 %v846, %v846
        %v911 = vmul.f32 %v847, %v847
        %v912 = vmul.f32 %v848, %v848
        %v913 = vmul.f32 %v849, %v849
        %v914 = vmul.f32 %v850, %v850
        %v915 = vmul.f32 %v851, %v851
        %v916 = vmul.f32 %v852, %v852
        %v917 = vmul.f32 %v853, %v853
        %v918 = vmul.f32 %v854, %v854
        %v919 = vmul.f32 %v855, %v855
        %v920 = vmul.f32 %v856, %v856
        %v921 = vmul.f32 %v857, %v857
        %v922 = vmul.f32 %v858, %v858
        %v923 = vmul.f32 %v859, %v859
        %v924 = vmul.f32 %v860, %v860
        %v925 = vmul.f32 %v861, %v861
        %v926 = vmul.f32 %v862, %v862
        %v927 = vmul.f32 %v863, %v863
        %v928 = vmul.f32 %v864, %v864
        %v929 = vmul.f32 %v865, %v865
        %v930 = vmul.f32 %v866, %v866
        %v931 = vmul.f32 %v867, %v867
        %v932 = vmul.f32 %v868, %v868
        %v933 = vmul.f32 %v869, %v869
        %v934 = vmul.f32 %v870, %v870
        %v935 = vmul.f32 %v871, %v871
        %v936 = vmul.f32 %v872, %v872
        %v937 = vmul.f32 %v873, %v873
        %v938 = vmul.f32 %v874, %v874
        %v939 = vmul.f32 %v875, %v875
        %v940 = vmul.f32 %v876, %v876
        %v941 = vmul.f32 %v877, %v877
        %v942 = vmul.f32 %v878, %v878
        %v943 = vmul.f32 %v879, %v879
        %v944 = vmul.f32 %v880, %v880
        %v945 = vmul.f32 %v881, %v881
        %v946 = vmul.f32 %v882, %v882
        %v947 = vmul.f32 %v883, %v883
        %v948 = vmul.f32 %v884, %v884
        %v949 = vmul.f32 %v885, %v885
        %v950 = vmul.f32 %v886, %v886
        %v951 = vmul.f32 %v887, %v887
        %v952 = vmul.f32 %v888, %v824
        %v953 = vmul.f32 %v889, %v825
        %v954 = vmul.f32 %v890, %v826
        %v955 = vmul.f32 %v891, %v827
        %v956 = vmul.f32 %v892, %v828
        %v957 = vmul.f32 %v893, %v829
        %v958 = vmul.f32 %v894, %v830
        %v959 = vmul.f32 %v895, %v831
        %v960 = vmul.f32 %v896, %v832
        %v961 = vmul.f32 %v897, %v833
        %v962 = vmul.f32 %v898, %v834
        %v963 = vmul.f32 %v899, %v835
        %v964 = vmul.f32 %v900, %v836
        %v965 = vmul.f32 %v901, %v837
        %v966 = vmul.f32 %v902, %v838
        %v967 = vmul.f32 %v903, %v839
        %v968 = vmul.f32 %v904, %v840
        %v969 = vmul.f32 %v905, %v841
        %v970 = vmul.f32 %v906, %v842
        %v971 = vmul.f32 %v907, %v843
        %v972 = vmul.f32 %v908, %v844
        %v973 = vmul.f32 %v909, %v845
        %v974 = vmul.f32 %v910, %v846
        %v975 = vmul.f32 %v911, %v847
        %v976 = vmul.f32 %v912, %v848
        %v977 = vmul.f32 %v913, %v849
        %v978 = vmul.f32 %v914, %v850
        %v979 = vmul.f32 %v915, %v851
        %v980 = vmul.f32 %v916, %v852
        %v981 = vmul.f32 %v917, %v853
        %v982 = vmul.f32 %v918, %v854
        %v983 = vmul.f32 %v919, %v855
        %v984 = vmul.f32 %v920, %v856
        %v985 = vmul.f32 %v921, %v857
        %v986 = vmul.f32 %v922, %v858
        %v987 = vmul.f32 %v923, %v859
        %v988 = vmul.f32 %v924, %v860
        %v989 = vmul.f32 %v925, %v861
        %v990 = vmul.f32 %v926, %v862
        %v991 = vmul.f32 %v927, %v863
        %v992 = vmul.f32 %v928, %v864
        %v993 = vmul.f32 %v929, %v865
        %v994 = vmul.f32 %v930, %v866
        %v995 = vmul.f32 %v931, %v867
        %v996 = vmul.f32 %v932, %v868
        %v997 = vmul.f32 %v933, %v869
        %v998 = vmul.f32 %v934, %v870
        %v999 = vmul.f32 %v935, %v871
        %v1000 = vmul.f32 %v936, %v872
        %v1001 = vmul.f32 %v937, %v873
        %v1002 = vmul.f32 %v938, %v874
        %v1003 = vmul.f32 %v939, %v875
        %v1004 = vmul.f32 %v940, %v876
        %v1005 = vmul.f32 %v941, %v877
        %v1006 = vmul.f32 %v942, %v878
        %v1007 = vmul.f32 %v943, %v879
        %v1008 = vmul.f32 %v944, %v880
        %v1009 = vmul.f32 %v945, %v881
        %v1010 = vmul.f32 %v946, %v882
        %v1011 = vmul.f32 %v947, %v883
        %v1012 = vmul.f32 %v948, %v884
        %v1013 = vmul.f32 %v949, %v885
        %v1014 = vmul.f32 %v950, %v886
        %v1015 = vmul.f32 %v951, %v887
        %v1016 = vld [vmem:[#allocation2] sm:$0xff]
        %v1017 = vld [vmem:[#allocation2 + $0x8] sm:$0xff]
        %v1018 = vld [vmem:[#allocation2 + $0x10] sm:$0xff]
        %v1019 = vld [vmem:[#allocation2 + $0x18] sm:$0xff]
        %v1020 = vld [vmem:[#allocation2 + $0x20] sm:$0xff]
        %v1021 = vld [vmem:[#allocation2 + $0x28] sm:$0xff]
        %v1022 = vld [vmem:[#allocation2 + $0x30] sm:$0xff]
        %v1023 = vld [vmem:[#allocation2 + $0x38] sm:$0xff]
        %v1024 = vadd.f32 %v952, %v960
        %v1025 = vadd.f32 %v1024, %v968
        %v1026 = vadd.f32 %v1025, %v976
        %v1027 = vadd.f32 %v1026, %v984
        %v1028 = vadd.f32 %v1027, %v992
        %v1029 = vadd.f32 %v1028, %v1000
        %v1030 = vadd.f32 %v1029, %v1008
        %v1031 = vadd.f32 %v953, %v961
        %v1032 = vadd.f32 %v1031, %v969
        %v1033 = vadd.f32 %v1032, %v977
        %v1034 = vadd.f32 %v1033, %v985
        %v1035 = vadd.f32 %v1034, %v993
        %v1036 = vadd.f32 %v1035, %v1001
        %v1037 = vadd.f32 %v1036, %v1009
        %v1038 = vadd.f32 %v954, %v962
        %v1039 = vadd.f32 %v1038, %v970
        %v1040 = vadd.f32 %v1039, %v978
        %v1041 = vadd.f32 %v1040, %v986
        %v1042 = vadd.f32 %v1041, %v994
        %v1043 = vadd.f32 %v1042, %v1002
        %v1044 = vadd.f32 %v1043, %v1010
        %v1045 = vadd.f32 %v955, %v963
        %v1046 = vadd.f32 %v1045, %v971
        %v1047 = vadd.f32 %v1046, %v979
        %v1048 = vadd.f32 %v1047, %v987
        %v1049 = vadd.f32 %v1048, %v995
        %v1050 = vadd.f32 %v1049, %v1003
        %v1051 = vadd.f32 %v1050, %v1011
        %v1052 = vadd.f32 %v956, %v964
        %v1053 = vadd.f32 %v1052, %v972
        %v1054 = vadd.f32 %v1053, %v980
        %v1055 = vadd.f32 %v1054, %v988
        %v1056 = vadd.f32 %v1055, %v996
        %v1057 = vadd.f32 %v1056, %v1004
        %v1058 = vadd.f32 %v1057, %v1012
        %v1059 = vadd.f32 %v957, %v965
        %v1060 = vadd.f32 %v1059, %v973
        %v1061 = vadd.f32 %v1060, %v981
        %v1062 = vadd.f32 %v1061, %v989
        %v1063 = vadd.f32 %v1062, %v997
        %v1064 = vadd.f32 %v1063, %v1005
        %v1065 = vadd.f32 %v1064, %v1013
        %v1066 = vadd.f32 %v958, %v966
        %v1067 = vadd.f32 %v1066, %v974
        %v1068 = vadd.f32 %v1067, %v982
        %v1069 = vadd.f32 %v1068, %v990
        %v1070 = vadd.f32 %v1069, %v998
        %v1071 = vadd.f32 %v1070, %v1006
        %v1072 = vadd.f32 %v1071, %v1014
        %v1073 = vadd.f32 %v959, %v967
        %v1074 = vadd.f32 %v1073, %v975
        %v1075 = vadd.f32 %v1074, %v983
        %v1076 = vadd.f32 %v1075, %v991
        %v1077 = vadd.f32 %v1076, %v999
        %v1078 = vadd.f32 %v1077, %v1007
        %v1079 = vadd.f32 %v1078, %v1015
        %v1080 = vadd.f32 %v1016, %v1030
        %v1081 = vadd.f32 %v1017, %v1037
        %v1082 = vadd.f32 %v1018, %v1044
        %v1083 = vadd.f32 %v1019, %v1051
        %v1084 = vadd.f32 %v1020, %v1058
        %v1085 = vadd.f32 %v1021, %v1065
        %v1086 = vadd.f32 %v1022, %v1072
        %v1087 = vadd.f32 %v1023, %v1079
        %1088 = vst [vmem:[#allocation2] sm:$0xff] %v1080
        %1089 = vst [vmem:[#allocation2 + $0x8] sm:$0xff] %v1081
        %1090 = vst [vmem:[#allocation2 + $0x10] sm:$0xff] %v1082
        %1091 = vst [vmem:[#allocation2 + $0x18] sm:$0xff] %v1083
        %1092 = vst [vmem:[#allocation2 + $0x20] sm:$0xff] %v1084
        %1093 = vst [vmem:[#allocation2 + $0x28] sm:$0xff] %v1085
        %1094 = vst [vmem:[#allocation2 + $0x30] sm:$0xff] %v1086
        %1095 = vst [vmem:[#allocation2 + $0x38] sm:$0xff] %v1087
        %p1096 = scmp.eq.s32.totalorder %s25, 1
        // Predicated region
        $region41: #{tpu_custom_call.1} parent=35 // pred_check
          %p1097 = pneg %p1096
        $region42: #{tpu_custom_call.1} parent=35 // pred_check_branch
          %1099 = sbr.rel (%p1097) target = $region44
        $region43: #{tpu_custom_call.1} parent=35 // pred_region
          %v1100 = vld [vmem:[#allocation2] sm:$0xff]
          %v1101 = vld [vmem:[#allocation2 + $0x8] sm:$0xff]
          %v1102 = vld [vmem:[#allocation2 + $0x10] sm:$0xff]
          %v1103 = vld [vmem:[#allocation2 + $0x18] sm:$0xff]
          %v1104 = vld [vmem:[#allocation2 + $0x20] sm:$0xff]
          %v1105 = vld [vmem:[#allocation2 + $0x28] sm:$0xff]
          %v1106 = vld [vmem:[#allocation2 + $0x30] sm:$0xff]
          %v1107 = vld [vmem:[#allocation2 + $0x38] sm:$0xff]
          %v1108 = vrot.slane %v1100, 4
          %v1109 = vadd.f32 %v1100, %v1108
          %v1110 = vrot.slane %v1109, 2
          %v1111 = vadd.f32 %v1109, %v1110
          %v1112 = vrot.slane %v1111, 1
          %v1113 = vadd.f32 %v1111, %v1112
          %v1114 = vrot.slane %v1101, 4
          %v1115 = vadd.f32 %v1101, %v1114
          %v1116 = vrot.slane %v1115, 2
          %v1117 = vadd.f32 %v1115, %v1116
          %v1118 = vrot.slane %v1117, 1
          %v1119 = vadd.f32 %v1117, %v1118
          %v1120 = vrot.slane %v1102, 4
          %v1121 = vadd.f32 %v1102, %v1120
          %v1122 = vrot.slane %v1121, 2
          %v1123 = vadd.f32 %v1121, %v1122
          %v1124 = vrot.slane %v1123, 1
          %v1125 = vadd.f32 %v1123, %v1124
          %v1126 = vrot.slane %v1103, 4
          %v1127 = vadd.f32 %v1103, %v1126
          %v1128 = vrot.slane %v1127, 2
          %v1129 = vadd.f32 %v1127, %v1128
          %v1130 = vrot.slane %v1129, 1
          %v1131 = vadd.f32 %v1129, %v1130
          %v1132 = vrot.slane %v1104, 4
          %v1133 = vadd.f32 %v1104, %v1132
          %v1134 = vrot.slane %v1133, 2
          %v1135 = vadd.f32 %v1133, %v1134
          %v1136 = vrot.slane %v1135, 1
          %v1137 = vadd.f32 %v1135, %v1136
          %v1138 = vrot.slane %v1105, 4
          %v1139 = vadd.f32 %v1105, %v1138
          %v1140 = vrot.slane %v1139, 2
          %v1141 = vadd.f32 %v1139, %v1140
          %v1142 = vrot.slane %v1141, 1
          %v1143 = vadd.f32 %v1141, %v1142
          %v1144 = vrot.slane %v1106, 4
          %v1145 = vadd.f32 %v1106, %v1144
          %v1146 = vrot.slane %v1145, 2
          %v1147 = vadd.f32 %v1145, %v1146
          %v1148 = vrot.slane %v1147, 1
          %v1149 = vadd.f32 %v1147, %v1148
          %v1150 = vrot.slane %v1107, 4
          %v1151 = vadd.f32 %v1107, %v1150
          %v1152 = vrot.slane %v1151, 2
          %v1153 = vadd.f32 %v1151, %v1152
          %v1154 = vrot.slane %v1153, 1
          %v1155 = vadd.f32 %v1153, %v1154
          %v1156 = vmul.f32 %v1113, 0.0078125
          %v1157 = vmul.f32 %v1119, 0.0078125
          %v1158 = vmul.f32 %v1125, 0.0078125
          %v1159 = vmul.f32 %v1131, 0.0078125
          %v1160 = vmul.f32 %v1137, 0.0078125
          %v1161 = vmul.f32 %v1143, 0.0078125
          %v1162 = vmul.f32 %v1149, 0.0078125
          %v1163 = vmul.f32 %v1155, 0.0078125
          %v1164 = vlog2.pop %v1156
          %v1165 = vmul.f32 %v1164, 0.6931472
          %v1166 = vlog2.pop %v1157
          %v1167 = vmul.f32 %v1166, 0.6931472
          %v1168 = vlog2.pop %v1158
          %v1169 = vmul.f32 %v1168, 0.6931472
          %v1170 = vlog2.pop %v1159
          %v1171 = vmul.f32 %v1170, 0.6931472
          %v1172 = vlog2.pop %v1160
          %v1173 = vmul.f32 %v1172, 0.6931472
          %v1174 = vlog2.pop %v1161
          %v1175 = vmul.f32 %v1174, 0.6931472
          %v1176 = vlog2.pop %v1162
          %v1177 = vmul.f32 %v1176, 0.6931472
          %v1178 = vlog2.pop %v1163
          %v1179 = vmul.f32 %v1178, 0.6931472
          %v1180 = vmul.f32 %v1165, 0.33333334
          %v1181 = vmul.f32 %v1167, 0.33333334
          %v1182 = vmul.f32 %v1169, 0.33333334
          %v1183 = vmul.f32 %v1171, 0.33333334
          %v1184 = vmul.f32 %v1173, 0.33333334
          %v1185 = vmul.f32 %v1175, 0.33333334
          %v1186 = vmul.f32 %v1177, 0.33333334
          %v1187 = vmul.f32 %v1179, 0.33333334
          %v1188 = vmul.f32 %v1180, 1.442695
          %v1189 = vpow.pop %v1188
          %v1190 = vmul.f32 %v1181, 1.442695
          %v1191 = vpow.pop %v1190
          %v1192 = vmul.f32 %v1182, 1.442695
          %v1193 = vpow.pop %v1192
          %v1194 = vmul.f32 %v1183, 1.442695
          %v1195 = vpow.pop %v1194
          %v1196 = vmul.f32 %v1184, 1.442695
          %v1197 = vpow.pop %v1196
          %v1198 = vmul.f32 %v1185, 1.442695
          %v1199 = vpow.pop %v1198
          %v1200 = vmul.f32 %v1186, 1.442695
          %v1201 = vpow.pop %v1200
          %v1202 = vmul.f32 %v1187, 1.442695
          %v1203 = vpow.pop %v1202
          %v1204 = vld [vmem:[%s286] sm:$0xff]
          %v1206 = vlaneseq
          %v1207 = vshrl.u32 %v1206, 7
          %v1208 = vsub.s32 0, %v1207
          %v1209 = vrot.slane %v1204, %v1208
          %v1210 = vlaneseq
          %v1211 = vshrl.u32 %v1210, 7
          %v1212 = vsub.s32 1, %v1211
          %v1213 = vrot.slane %v1204, %v1212
          %v1214 = vlaneseq
          %v1215 = vshrl.u32 %v1214, 7
          %v1216 = vsub.s32 2, %v1215
          %v1217 = vrot.slane %v1204, %v1216
          %v1218 = vlaneseq
          %v1219 = vshrl.u32 %v1218, 7
          %v1220 = vsub.s32 3, %v1219
          %v1221 = vrot.slane %v1204, %v1220
          %v1222 = vlaneseq
          %v1223 = vshrl.u32 %v1222, 7
          %v1224 = vsub.s32 4, %v1223
          %v1225 = vrot.slane %v1204, %v1224
          %v1226 = vlaneseq
          %v1227 = vshrl.u32 %v1226, 7
          %v1228 = vsub.s32 5, %v1227
          %v1229 = vrot.slane %v1204, %v1228
          %v1230 = vlaneseq
          %v1231 = vshrl.u32 %v1230, 7
          %v1232 = vsub.s32 6, %v1231
          %v1233 = vrot.slane %v1204, %v1232
          %v1234 = vlaneseq
          %v1235 = vshrl.u32 %v1234, 7
          %v1236 = vsub.s32 7, %v1235
          %v1237 = vrot.slane %v1204, %v1236
          %v1246 = vmul.f32 %v1189, %v1209
          %v1247 = vmul.f32 %v1191, %v1213
          %v1248 = vmul.f32 %v1193, %v1217
          %v1249 = vmul.f32 %v1195, %v1221
          %v1250 = vmul.f32 %v1197, %v1225
          %v1251 = vmul.f32 %v1199, %v1229
          %v1252 = vmul.f32 %v1201, %v1233
          %v1253 = vmul.f32 %v1203, %v1237
          %v1254 = vld [vmem:[%s291] sm:$0xff]
          %v1256 = vlaneseq
          %v1257 = vshrl.u32 %v1256, 7
          %v1258 = vsub.s32 0, %v1257
          %v1259 = vrot.slane %v1254, %v1258
          %v1260 = vlaneseq
          %v1261 = vshrl.u32 %v1260, 7
          %v1262 = vsub.s32 1, %v1261
          %v1263 = vrot.slane %v1254, %v1262
          %v1264 = vlaneseq
          %v1265 = vshrl.u32 %v1264, 7
          %v1266 = vsub.s32 2, %v1265
          %v1267 = vrot.slane %v1254, %v1266
          %v1268 = vlaneseq
          %v1269 = vshrl.u32 %v1268, 7
          %v1270 = vsub.s32 3, %v1269
          %v1271 = vrot.slane %v1254, %v1270
          %v1272 = vlaneseq
          %v1273 = vshrl.u32 %v1272, 7
          %v1274 = vsub.s32 4, %v1273
          %v1275 = vrot.slane %v1254, %v1274
          %v1276 = vlaneseq
          %v1277 = vshrl.u32 %v1276, 7
          %v1278 = vsub.s32 5, %v1277
          %v1279 = vrot.slane %v1254, %v1278
          %v1280 = vlaneseq
          %v1281 = vshrl.u32 %v1280, 7
          %v1282 = vsub.s32 6, %v1281
          %v1283 = vrot.slane %v1254, %v1282
          %v1284 = vlaneseq
          %v1285 = vshrl.u32 %v1284, 7
          %v1286 = vsub.s32 7, %v1285
          %v1287 = vrot.slane %v1254, %v1286
          %v1296 = vadd.f32 %v1246, %v1259
          %v1297 = vadd.f32 %v1247, %v1263
          %v1298 = vadd.f32 %v1248, %v1267
          %v1299 = vadd.f32 %v1249, %v1271
          %v1300 = vadd.f32 %v1250, %v1275
          %v1301 = vadd.f32 %v1251, %v1279
          %v1302 = vadd.f32 %v1252, %v1283
          %v1303 = vadd.f32 %v1253, %v1287
          %v1312 = vcombine.low %v1296, %v1297
          %v1313 = vcombine.low %v1298, %v1299
          %v1314 = vcombine.low %v1300, %v1301
          %v1315 = vcombine.low %v1302, %v1303
          %v1317 = vunpack.c.l.s4 1966171168
          %v1318 = vunpack.c.0.s8 %v1317
          %v1319 = vlaneseq
          %v1320 = vshrl.u32 %v1319, 7
          %v1321 = vsub.s32 %v1318, %v1320
          %v1322 = vrot.slane %v1312, %v1321
          %v1324 = vunpack.c.l.s4 1966171168
          %v1325 = vunpack.c.0.s8 %v1324
          %v1326 = vlaneseq
          %v1327 = vshrl.u32 %v1326, 7
          %v1328 = vsub.s32 %v1325, %v1327
          %v1329 = vrot.slane %v1313, %v1328
          %v1331 = vunpack.c.l.s4 1966171168
          %v1332 = vunpack.c.0.s8 %v1331
          %v1333 = vlaneseq
          %v1334 = vshrl.u32 %v1333, 7
          %v1335 = vsub.s32 %v1332, %v1334
          %v1336 = vrot.slane %v1314, %v1335
          %v1338 = vunpack.c.l.s4 1966171168
          %v1339 = vunpack.c.0.s8 %v1338
          %v1340 = vlaneseq
          %v1341 = vshrl.u32 %v1340, 7
          %v1342 = vsub.s32 %v1339, %v1341
          %v1343 = vrot.slane %v1315, %v1342
          %v1344 = vcombine.low %v1322, %v1329
          %v1345 = vcombine.low %v1336, %v1343
          %v1347 = vunpack.c.l.s4 1966171168
          %v1348 = vunpack.c.0.s8 %v1347
          %v1349 = vlaneseq
          %v1350 = vshrl.u32 %v1349, 7
          %v1351 = vsub.s32 %v1348, %v1350
          %v1352 = vrot.slane %v1344, %v1351
          %v1354 = vunpack.c.l.s4 1966171168
          %v1355 = vunpack.c.0.s8 %v1354
          %v1356 = vlaneseq
          %v1357 = vshrl.u32 %v1356, 7
          %v1358 = vsub.s32 %v1355, %v1357
          %v1359 = vrot.slane %v1345, %v1358
          %v1360 = vcombine.low %v1352, %v1359
          %1362 = vst [vmem:[%s266] sm:$0xff] %v1360
        $region44: #{tpu_custom_call.1} parent=35 // pred_fallthru
          _
        %s1363 = sand.u32 %s153, 1
        %s1364 = scalar_lea.sflag [#allocation4], %s1363
        %s1365 = sand.u32 %s153, 1
        %s1366 = smul.addr %s1365, 8
        %s1367 = scalar_lea.vmem [#allocation3], %s1366
        // Predicated region
        $region45: #{tpu_custom_call.1} parent=35 // pred_check
          %p1368 = pneg %p163
        $region46: #{tpu_custom_call.1} parent=35 // pred_check_branch
          %1370 = sbr.rel (%p1368) target = $region48
        $region47: #{tpu_custom_call.1} parent=35 // pred_region
          %s1371 = smul.u32 8, %s24
          %s1373 = ssub.s32 128, 128
          %1374 = vsyncadd %s1364, %s1373
          %s1375 = smul.addr %s23, 16
          %s1376 = sadd.s32 %s1371, %s1375
          %s1377 = smul.addr %s1376, 16
          %s1378 = scalar_lea.hbm %s4, %s1377
          %s1380 = sshll.u32 %s1367, 4
          %s1381 = int_to_ptr.vmem [resolvable:$true] %s1380
          %1383 = dma.vmem_to_hbm [thread:$0]  %s1381, 128, %s1378, %s1364
        $region48: #{tpu_custom_call.1} parent=35 // pred_fallthru
          _
      $region36: #{tpu_custom_call.1} parent=5 // pred_fallthru
        _
      %p1384 = scmp.le.s32.totalorder 2, %s13
      // Predicated region
      $region49: #{tpu_custom_call.1} parent=5 // pred_check
        %p1385 = pneg %p1384
      $region50: #{tpu_custom_call.1} parent=5 // pred_check_branch
        %1387 = sbr.rel (%p1385) target = $region52
      $region51: #{tpu_custom_call.1} parent=5 // pred_region
        %s1388 = ssub.s32 %s13, 2
        // Predicated region
        $region53: #{tpu_custom_call.1} parent=51 // pred_check
          %p1389 = pneg %p169
        $region54: #{tpu_custom_call.1} parent=51 // pred_check_branch
          %1391 = sbr.rel (%p1389) target = $region56
        $region55: #{tpu_custom_call.1} parent=51 // pred_region
          %s1392 = sand.u32 %s154, 1
          %s1393 = scalar_lea.sflag [#allocation4], %s1392
          %s1394 = sand.u32 %s154, 1
          %s1395 = smul.addr %s1394, 8
          %s1396 = scalar_lea.vmem [#allocation3], %s1395
          %1397 = dma.done %s1393, 128
        $region56: #{tpu_custom_call.1} parent=51 // pred_fallthru
          _
      $region52: #{tpu_custom_call.1} parent=5 // pred_fallthru
        _
    $region6: #{tpu_custom_call.1} parent=1 // loop_footer
      %s17 = sadd.s32 1, %s13
    $region7: #{tpu_custom_call.1} parent=1 // loop_footer_branch
      %12 = sbr.rel target = $region3
    $region8: #{tpu_custom_call.1} parent=1 // loop_exit
      _
    %1398 = vsyncpa [#allocation4], 1
    %s1399 = scalar_lea.sflag [#allocation4], 1
    %1400 = vsyncpa %s1399, 1

</llo_original>
